<compile_context>
chip_gen: v6e
topology: v6e:2x2x1
jax: 0.10.0
libtpu: 0.0.40
codegen_flags: <defaults>
</compile_context>

<pallas_src>
import functools

import jax
import jax.numpy as jnp
from jax.experimental import pallas as pl
from jax.experimental.pallas import tpu as pltpu

_LANE = 128
_SUBLANE = 8
_ROW_ALIGN = 32   # int8 packs 4 rows/sublane word: keep the row-tile a multiple of 32


def _ce_kernel(d_ref, c_ref, w_ref, out_ref):
    """One N-tile of the weighted soft-target cross-entropy.

    d_ref:   (R, 128)    f32   logit margins d = x[:,1] - x[:,0], samples mapped lane-dense.
    c_ref:   (R, 128)    int8  class codes in {0, 1}; -1 marks padding.
    w_ref:   (2,)        f32   class weights, resident in SMEM.
    out_ref: (1, 8, 128) f32   per-tile (sublane, lane) partial sums.
    """
    d = d_ref[...]
    c = c_ref[...].astype(jnp.int32)          # cheap VPU unpack of the packed int8 stream

    # p = softmax([x0, x1])  =>  g = p1 - p0 = tanh(d / 2)        (EUP tanh)
    g = jnp.tanh(d * 0.5)

    # cross_entropy then applies log_softmax to p:
    #   -log_softmax(p)[1] = log(1 + exp(-g)),  -log_softmax(p)[0] = log(1 + exp(+g))
    is_one = c == 1
    z = jnp.where(is_one, -g, g)              # z in (-1, 1): exp cannot overflow
    nll = jnp.log(1.0 + jnp.exp(z))           # EUP exp + log

    w_t = jnp.where(is_one, w_ref[1], w_ref[0])        # class-weight pick (no one-hot)
    contrib = jnp.where(c >= 0, w_t * nll, 0.0)        # padded samples contribute 0 (select, not *0)

    # (8, 128) vector accumulator: tile-aligned reshape + leading-axis sum = plain vreg adds.
    r = contrib.shape[0]
    psum = jnp.sum(contrib.reshape(r // _SUBLANE, _SUBLANE, _LANE), axis=0)
    out_ref[...] = psum[None]


@functools.partial(jax.jit, static_argnames=("max_rows_per_tile",))
def cross_entropy_loss(x, target, weight, *, max_rows_per_tile=4096):
    """x: [N, 2] float logits, target: [N] int in {0, 1}, weight: [2] float -> scalar f32 loss."""
    N, C = x.shape
    assert C == 2, "the module hard-codes one_hot(target, 2), so C must be 2"

    # Lane-dense restructure (single fused prep pass; allow_input_fusion lets XLA fold it into
    # the pallas_call input pipeline so these intermediates never hit HBM).
    d = (x[:, 1] - x[:, 0]).astype(jnp.float32)               # [N] f32 logit margin
    code = target.astype(jnp.int8)                             # [N] int8 class code in {0, 1}
    w = jnp.asarray(weight, dtype=jnp.float32).reshape(2)      # [2] -> SMEM

    # Tile N over (sublane, lane): rows of 128 samples, row tiles multiples of 32 (int8 packing).
    rows_total = pl.cdiv(N, _LANE)
    aligned_rows = _ROW_ALIGN * pl.cdiv(rows_total, _ROW_ALIGN)
    max_rows = max(_ROW_ALIGN, (max_rows_per_tile // _ROW_ALIGN) * _ROW_ALIGN)
    rows_per_tile = min(max_rows, aligned_rows)
    if aligned_rows >= 2 * _ROW_ALIGN:
        # keep >= 2 grid steps so the "parallel" axis can shard tiles over v7x's two TensorCores
        rows_per_tile = min(rows_per_tile, _ROW_ALIGN * (aligned_rows // (2 * _ROW_ALIGN)))
    n_tiles = pl.cdiv(aligned_rows, rows_per_tile)
    rows_pad = n_tiles * rows_per_tile
    n_pad = rows_pad * _LANE

    pad = n_pad - N
    d = jnp.pad(d, (0, pad)).reshape(rows_pad, _LANE)
    code = jnp.pad(code, (0, pad), constant_values=-1).reshape(rows_pad, _LANE)

    partials = pl.pallas_call(
        _ce_kernel,
        out_shape=jax.ShapeDtypeStruct((n_tiles, _SUBLANE, _LANE), jnp.float32),
        grid=(n_tiles,),
        in_specs=[
            pl.BlockSpec((rows_per_tile, _LANE), lambda i: (i, 0)),     # d tile (f32)
            pl.BlockSpec((rows_per_tile, _LANE), lambda i: (i, 0)),     # class-code tile (int8)
            pl.BlockSpec(memory_space=pltpu.MemorySpace.SMEM),          # class weights (whole, SMEM)
        ],
        out_specs=pl.BlockSpec((1, _SUBLANE, _LANE), lambda i: (i, 0, 0)),
        compiler_params=pltpu.CompilerParams(
            # Tiles are fully independent (disjoint in/out blocks): v7x can shard over 2 TCs.
            dimension_semantics=("parallel",),
            # Let XLA fuse the margin/cast/pad producers into the kernel's input pipeline so the
            # prep intermediates never materialize in HBM (~28 B/sample -> ~12 B/sample).
            allow_input_fusion=(True, True, False),
            # Headroom for double-buffered 4096-row tiles everywhere (v5e default is only 16 MiB).
            vmem_limit_bytes=32 * 1024 * 1024,
        ),
        cost_estimate=pl.CostEstimate(
            flops=8 * n_pad,
            transcendentals=3 * n_pad,
            bytes_accessed=5 * n_pad + 4 * n_tiles * _SUBLANE * _LANE,
        ),
    )(d, code, w)

    # Soft-target reduction='mean' divides by N (no weight renormalization).
    return jnp.sum(partials) / jnp.float32(N)


if __name__ == "__main__":
    key = jax.random.PRNGKey(0)
    k_x, k_t, k_x2, k_t2 = jax.random.split(key, 4)

    def ref_loss(x, target, weight):
        # pure-JAX reference of the module's semantics (f32 instead of f64)
        p = jax.nn.softmax(x.astype(jnp.float32), axis=-1)
        log_q = jax.nn.log_softmax(p, axis=-1)
        y = jax.nn.one_hot(target, x.shape[-1], dtype=jnp.float32)
        return jnp.mean(-jnp.sum(weight[None, :] * y * log_q, axis=-1))

    # primary check: the module's shapes (one_hot(target, 2) fixes C = 2)
    N, C = 8, 2
    x = jax.random.normal(k_x, (N, C), dtype=jnp.float32)
    target = jax.random.randint(k_t, (N,), 0, C, dtype=jnp.int32)
    weight = jnp.array([1.0, 2.0], dtype=jnp.float32)

    loss = cross_entropy_loss(x, target, weight)
    jax.block_until_ready(loss)
    ref = ref_loss(x, target, weight)
    assert jnp.allclose(loss, ref, atol=1e-5, rtol=1e-5), (loss, ref)

    # secondary check: multi-tile grid (2 parallel steps) + ragged padding/mask path
    N2 = 5000
    x2 = jax.random.normal(k_x2, (N2, C), dtype=jnp.float32)
    target2 = jax.random.randint(k_t2, (N2,), 0, C, dtype=jnp.int32)
    loss2 = cross_entropy_loss(x2, target2, weight, max_rows_per_tile=32)
    jax.block_until_ready(loss2)
    ref2 = ref_loss(x2, target2, weight)
    assert jnp.allclose(loss2, ref2, atol=1e-5, rtol=1e-5), (loss2, ref2)

    print("KERNEL_OK")
</pallas_src>

<mosaic_0001>
module attributes {stable_mosaic.version = 11 : i64} {
  func.func @_ce_kernel(%arg0: i32, %arg1: memref<32x128xf32, #tpu.memory_space<vmem>>, %arg2: memref<32x128xi8, #tpu.memory_space<vmem>>, %arg3: memref<2xf32, #tpu.memory_space<smem>>, %arg4: memref<1x8x128xf32, #tpu.memory_space<vmem>>) attributes {dimension_semantics = [#tpu.dimension_semantics<parallel>], iteration_bounds = array<i64: 1>, scalar_prefetch = 0 : i64, scratch_operands = 0 : i64, tpu.core_type = #tpu.core_type<tc>, window_params = [{transform_indices = @transform_0, window_bounds = array<i64: 32, 128>}, {transform_indices = @transform_1, window_bounds = array<i64: 32, 128>}, {transform_indices = @transform_2, window_bounds = array<i64: 2>}, {transform_indices = @transform_3, window_bounds = array<i64: 1, 8, 128>}]} {
    %c0 = arith.constant 0 : index
    %c0_0 = arith.constant 0 : index
    %0 = vector.load %arg1[%c0, %c0_0] : memref<32x128xf32, #tpu.memory_space<vmem>>, vector<32x128xf32>
    %c0_1 = arith.constant 0 : index
    %c0_2 = arith.constant 0 : index
    %1 = vector.load %arg2[%c0_1, %c0_2] : memref<32x128xi8, #tpu.memory_space<vmem>>, vector<32x128xi8>
    %2 = arith.extsi %1 : vector<32x128xi8> to vector<32x128xi32>
    %cst = arith.constant 5.000000e-01 : f32
    %3 = vector.broadcast %cst : f32 to vector<32x128xf32>
    %4 = arith.mulf %0, %3 : vector<32x128xf32>
    %5 = math.tanh %4 : vector<32x128xf32>
    %c1_i32 = arith.constant 1 : i32
    %6 = vector.broadcast %c1_i32 : i32 to vector<32x128xi32>
    %7 = arith.cmpi eq, %2, %6 : vector<32x128xi32>
    %cst_3 = arith.constant 0.000000e+00 : f32
    %8 = vector.broadcast %cst_3 : f32 to vector<32x128xf32>
    %9 = arith.subf %8, %5 : vector<32x128xf32>
    %10 = arith.select %7, %9, %5 : vector<32x128xi1>, vector<32x128xf32>
    %11 = math.exp %10 : vector<32x128xf32>
    %cst_4 = arith.constant 1.000000e+00 : f32
    %12 = vector.broadcast %cst_4 : f32 to vector<32x128xf32>
    %13 = arith.addf %12, %11 : vector<32x128xf32>
    %14 = math.log %13 : vector<32x128xf32>
    %c1 = arith.constant 1 : index
    %15 = memref.load %arg3[%c1] : memref<2xf32, #tpu.memory_space<smem>>
    %c0_5 = arith.constant 0 : index
    %16 = memref.load %arg3[%c0_5] : memref<2xf32, #tpu.memory_space<smem>>
    %17 = vector.broadcast %15 : f32 to vector<32x128xf32>
    %18 = vector.broadcast %16 : f32 to vector<32x128xf32>
    %19 = arith.select %7, %17, %18 : vector<32x128xi1>, vector<32x128xf32>
    %c0_i32 = arith.constant 0 : i32
    %20 = vector.broadcast %c0_i32 : i32 to vector<32x128xi32>
    %21 = arith.cmpi sge, %2, %20 : vector<32x128xi32>
    %22 = arith.mulf %19, %14 : vector<32x128xf32>
    %cst_6 = arith.constant 0.000000e+00 : f32
    %23 = vector.broadcast %cst_6 : f32 to vector<32x128xf32>
    %24 = arith.select %21, %22, %23 : vector<32x128xi1>, vector<32x128xf32>
    %25 = vector.shape_cast %24 : vector<32x128xf32> to vector<4x8x128xf32>
    %cst_7 = arith.constant dense<0.000000e+00> : vector<8x128xf32>
    %26 = vector.multi_reduction <add>, %25, %cst_7 [0] : vector<4x8x128xf32> to vector<8x128xf32>
    %27 = vector.shape_cast %26 : vector<8x128xf32> to vector<1x8x128xf32>
    %c0_8 = arith.constant 0 : index
    %c0_9 = arith.constant 0 : index
    %c0_10 = arith.constant 0 : index
    %28 = vector.load %arg4[%c0_8, %c0_9, %c0_10] : memref<1x8x128xf32, #tpu.memory_space<vmem>>, vector<1x8x128xf32>
    tpu.vector_store %arg4[%c0_8, %c0_9, %c0_10], %27 {strides = array<i32>} : memref<1x8x128xf32, #tpu.memory_space<vmem>>, vector<1x8x128xf32>,
    return
  }
  func.func @transform_0(%arg0: i32) -> (i32, i32) {
    %c0_i32 = arith.constant 0 : i32
    %c0_i32_0 = arith.constant 0 : i32
    return %arg0, %c0_i32 : i32, i32
  }
  func.func @transform_1(%arg0: i32) -> (i32, i32) {
    %c0_i32 = arith.constant 0 : i32
    %c0_i32_0 = arith.constant 0 : i32
    return %arg0, %c0_i32 : i32, i32
  }
  func.func @transform_2(%arg0: i32) -> i32 {
    %c0_i32 = arith.constant 0 : i32
    %c0_i32_0 = arith.constant 0 : i32
    return %c0_i32 : i32
  }
  func.func @transform_3(%arg0: i32) -> (i32, i32, i32) {
    %c0_i32 = arith.constant 0 : i32
    %c0_i32_0 = arith.constant 0 : i32
    %c0_i32_1 = arith.constant 0 : i32
    return %arg0, %c0_i32, %c0_i32_0 : i32, i32, i32
  }
}

</mosaic_0001>

<llo_original>
// kernel: cross_entropy_loss.2
$region0: #{cross_entropy_loss.2}
  #allocation0 [shape = 'u32[]', space=smem, size = 0x4, offset = 0x4, fixed_abs, tag = 'smem constant byte address 0x4 - core index']
  #allocation1 [shape = 'u32[144,128]{1,0:T(1,128)}', space=vmem, size = 0x12000, scoped, tag = 'internal scratch']
  #allocation2 [shape = 'u32[2048]{0}', space=vmem, size = 0x2000, scoped, tag = 'scoped memory for cross_entropy_loss.2']
  #allocation3 [shape = 'u32[2048]{0}', space=vmem, size = 0x2000, scoped, tag = 'scoped memory for cross_entropy_loss.2']
  #allocation4 [shape = 'u32[2048]{0}', space=vmem, size = 0x2000, scoped, tag = 'scoped memory for cross_entropy_loss.2']
  #allocation5 [shape = 'u32[2048]{0}', space=vmem, size = 0x2000, scoped, tag = 'scoped memory for cross_entropy_loss.2']
  #allocation6 [shape = 'u32[2048]{0}', space=vmem, size = 0x2000, scoped, tag = 'scoped memory for cross_entropy_loss.2']
  #allocation7 [shape = 'u32[2048]{0}', space=vmem, size = 0x2000, scoped, tag = 'scoped memory for cross_entropy_loss.2']
  #allocation8 [shape = 'u32[2048]{0}', space=vmem, size = 0x2000, scoped, tag = 'scoped memory for cross_entropy_loss.2']
  #allocation9 [shape = 'u32[2048]{0}', space=vmem, size = 0x2000, scoped, tag = 'scoped memory for cross_entropy_loss.2']
  #allocation10 [shape = 'u32[2048]{0}', space=vmem, size = 0x2000, scoped, tag = 'scoped memory for cross_entropy_loss.2']
  #allocation11 [shape = 'u32[2048]{0}', space=vmem, size = 0x2000, scoped, tag = 'scoped memory for cross_entropy_loss.2']
  %s0 = inlined_call_operand.vmem [shape: f32[2], index: 0, kind: input, shape index: {}]
  %s1 = inlined_call_operand.vmem [shape: f32[8], index: 1, kind: input, shape index: {}]
  %s2 = inlined_call_operand.<no memory space> [shape: f32[], index: 2, kind: input, shape index: {}]
  %s3 = inlined_call_operand.vmem [shape: s8[8], index: 3, kind: input, shape index: {}]
  %s4 = inlined_call_operand.<no memory space> [shape: s8[], index: 4, kind: input, shape index: {}]
  %s5 = inlined_call_operand.vmem [shape: f32[1,8,128], index: 5, kind: output, shape index: {}]
  %s6 = sld [smem:[#allocation0]]
  $region26: #{cross_entropy_loss.2} parent=0
    _
  %s8 = ssub.s32 1, %s6
  %s9 = scalar_select 0, %s8, %s6
  %v10 = vstv %s2
  %v11 = vstv %s4
  %v13 = vshll.u32 %v11, 24
  %v14 = vshra.s32 %v13, 24
  $region1: #{cross_entropy_loss.2} parent=0
    #allocation12 [shape = 'u8[512]{0}', space=smem, size = 0x200, scoped, tag = 'input window, operand 2, single buffered']
    #allocation13 [shape = 's32[1]{0}', space=sflag, size = 0x4, scoped, tag = 'scoped memory for cross_entropy_loss.2']
    #allocation14 [shape = 'u8[16384]{0}', space=vmem, size = 0x4000, dematerialized = true, scoped, tag = 'FusionAdapter Buffer %fusion.1 = f32[32,128]{1,0:T(8,128)} fusion(%param_1.5, %param_2.3), kind=kLoop, calls=%fused_computation.1.clone, metadata={op_name="jit(cross_entropy_loss)/reshape" stack_frame_id=12}']
    #allocation15 [shape = 'u8[4096]{0}', space=vmem, size = 0x1000, dematerialized = true, scoped, tag = 'FusionAdapter Buffer %fusion.3 = s8[32,128]{1,0:T(8,128)(4,1)} fusion(%param_3.2, %param_4), kind=kLoop, calls=%fused_computation.3.clone, metadata={op_name="jit(cross_entropy_loss)/reshape" stack_frame_id=14}']
    %15 = vsyncpa [#allocation13], 0
    // Predicated region
    $region2: #{cross_entropy_loss.2} parent=1 // pred_check
      _
    $region3: #{cross_entropy_loss.2} parent=1 // pred_check_branch
      %17 = sbr.rel (0) target = $region5
    $region4: #{cross_entropy_loss.2} parent=1 // pred_region
      _
    $region5: #{cross_entropy_loss.2} parent=1 // pred_fallthru
      _
    // Predicated region
    $region6: #{cross_entropy_loss.2} parent=1 // pred_check
      _
    $region7: #{cross_entropy_loss.2} parent=1 // pred_check_branch
      %19 = sbr.rel (0) target = $region9
    $region8: #{cross_entropy_loss.2} parent=1 // pred_region
      _
    $region9: #{cross_entropy_loss.2} parent=1 // pred_fallthru
      _
    // Predicated region
    $region10: #{cross_entropy_loss.2} parent=1 // pred_check
      _
    $region11: #{cross_entropy_loss.2} parent=1 // pred_check_branch
      %21 = sbr.rel (0) target = $region13
    $region12: #{cross_entropy_loss.2} parent=1 // pred_region
      %s23 = ssub.s32 16, 16
      %24 = vsyncadd [#allocation13], %s23
      %s26 = sshll.u32 %s0, 4
      %s27 = int_to_ptr.vmem [resolvable:$true] %s26
      %29 = dma.vmem_to_smem %s27, 16, [#allocation12], [#allocation13]
    $region13: #{cross_entropy_loss.2} parent=1 // pred_fallthru
      _
    // Predicated region
    $region14: #{cross_entropy_loss.2} parent=1 // pred_check
      _
    $region15: #{cross_entropy_loss.2} parent=1 // pred_check_branch
      %31 = sbr.rel (0) target = $region17
    $region16: #{cross_entropy_loss.2} parent=1 // pred_region
      %32 = dma.done [#allocation13], 16
    $region17: #{cross_entropy_loss.2} parent=1 // pred_fallthru
      _
    %33 = sfence
    %v34 = vld [vmem:[%s1] sm:$0x1]
    %v35 = vlaneseq
    %vm37 = vcmp.lt.s32.totalorder %v35, 8
    %v38 = vsel %vm37, %v34, %v10
    %s40 = ssub.s32 256, 1
    %41 = vst [vmem:[#allocation14] sm:%s40] %v38
    %s42 = scalar_lea.vmem [#allocation14], 8
    %s44 = ssub.s32 256, 1
    %45 = vst [vmem:[%s42] sm:%s44] %v10
    %s46 = scalar_lea.vmem [#allocation14], 16
    %s48 = ssub.s32 256, 1
    %49 = vst [vmem:[%s46] sm:%s48] %v10
    %s50 = scalar_lea.vmem [#allocation14], 24
    %s52 = ssub.s32 256, 1
    %53 = vst [vmem:[%s50] sm:%s52] %v10
    %v54 = vld [vmem:[%s3] ss:$0 sm:$0xf]
    %v55 = vunpack.c.0.s8 %v54
    %v56 = vunpack.c.1.s8 %v54
    %v57 = vunpack.c.2.s8 %v54
    %v58 = vunpack.c.3.s8 %v54
    %v59 = vlaneseq
    %vm61 = vcmp.lt.s32.totalorder %v59, 8
    %v62 = vsel %vm61, %v55, %v14
    %s64 = ssub.s32 4, 1
    %v65 = vpack.c.b16 0, %v62
    %v66 = vpack.c.b8 0, %v65
    %67 = vst [vmem:[#allocation15] sm:%s64] %v66
    %s68 = scalar_lea.vmem [#allocation15], 2
    %s70 = ssub.s32 4, 1
    %v71 = vpack.c.b16 0, %v14
    %v72 = vpack.c.b8 0, %v71
    %73 = vst [vmem:[%s68] sm:%s70] %v72
    %s74 = scalar_lea.vmem [#allocation15], 4
    %s76 = ssub.s32 4, 1
    %v77 = vpack.c.b16 0, %v14
    %v78 = vpack.c.b8 0, %v77
    %79 = vst [vmem:[%s74] sm:%s76] %v78
    %s80 = scalar_lea.vmem [#allocation15], 6
    %s82 = ssub.s32 4, 1
    %v83 = vpack.c.b16 0, %v14
    %v84 = vpack.c.b8 0, %v83
    %85 = vst [vmem:[%s80] sm:%s82] %v84
    %v86 = vld [vmem:[#allocation14] sm:$0xff]
    %v87 = vld [vmem:[#allocation14 + $0x8] sm:$0xff]
    %v88 = vld [vmem:[#allocation14 + $0x10] sm:$0xff]
    %v89 = vld [vmem:[#allocation14 + $0x18] sm:$0xff]
    %v90 = vld [vmem:[#allocation15] sm:$0x3]
    %v91 = vld [vmem:[#allocation15 + $0x2] sm:$0x3]
    %v92 = vld [vmem:[#allocation15 + $0x4] sm:$0x3]
    %v93 = vld [vmem:[#allocation15 + $0x6] sm:$0x3]
    %v94 = vunpack.c.0.s8 %v90
    %v95 = vunpack.c.0.s8 %v91
    %v96 = vunpack.c.0.s8 %v92
    %v97 = vunpack.c.0.s8 %v93
    %v98 = vmul.f32 %v86, 0.5
    %v99 = vmul.f32 %v87, 0.5
    %v100 = vmul.f32 %v88, 0.5
    %v101 = vmul.f32 %v89, 0.5
    %v102 = vtanh.pop %v98
    %v103 = vtanh.pop %v99
    %v104 = vtanh.pop %v100
    %v105 = vtanh.pop %v101
    %vm106 = vcmp.eq.s32.totalorder %v94, 1
    %vm107 = vcmp.eq.s32.totalorder %v95, 1
    %vm108 = vcmp.eq.s32.totalorder %v96, 1
    %vm109 = vcmp.eq.s32.totalorder %v97, 1
    %v110 = vsub.f32 0.0, %v102
    %v111 = vsub.f32 0.0, %v103
    %v112 = vsub.f32 0.0, %v104
    %v113 = vsub.f32 0.0, %v105
    %v114 = vsel %vm106, %v110, %v102
    %v115 = vsel %vm107, %v111, %v103
    %v116 = vsel %vm108, %v112, %v104
    %v117 = vsel %vm109, %v113, %v105
    %v118 = vmul.f32 %v114, 1.442695
    %v119 = vpow.pop %v118
    %v120 = vmul.f32 %v115, 1.442695
    %v121 = vpow.pop %v120
    %v122 = vmul.f32 %v116, 1.442695
    %v123 = vpow.pop %v122
    %v124 = vmul.f32 %v117, 1.442695
    %v125 = vpow.pop %v124
    %v126 = vadd.f32 %v119, 1.0
    %v127 = vadd.f32 %v121, 1.0
    %v128 = vadd.f32 %v123, 1.0
    %v129 = vadd.f32 %v125, 1.0
    %v130 = vlog2.pop %v126
    %v131 = vmul.f32 %v130, 0.6931472
    %v132 = vlog2.pop %v127
    %v133 = vmul.f32 %v132, 0.6931472
    %v134 = vlog2.pop %v128
    %v135 = vmul.f32 %v134, 0.6931472
    %v136 = vlog2.pop %v129
    %v137 = vmul.f32 %v136, 0.6931472
    %s138 = sld [smem:[#allocation12 + $0x1]]
    %s139 = sld [smem:[#allocation12]]
    %v140 = vstv %s138
    %v141 = vstv %s139
    %v142 = vsel %vm106, %v140, %v141
    %v143 = vsel %vm107, %v140, %v141
    %v144 = vsel %vm108, %v140, %v141
    %v145 = vsel %vm109, %v140, %v141
    %vm146 = vcmp.ge.s32.totalorder %v94, 0
    %vm147 = vcmp.ge.s32.totalorder %v95, 0
    %vm148 = vcmp.ge.s32.totalorder %v96, 0
    %vm149 = vcmp.ge.s32.totalorder %v97, 0
    %v150 = vmul.f32 %v142, %v131
    %v151 = vmul.f32 %v143, %v133
    %v152 = vmul.f32 %v144, %v135
    %v153 = vmul.f32 %v145, %v137
    %v154 = vsel %vm146, %v150, 0.0
    %v155 = vsel %vm147, %v151, 0.0
    %v156 = vsel %vm148, %v152, 0.0
    %v157 = vsel %vm149, %v153, 0.0
    %v158 = vadd.f32 %v154, %v155
    %v159 = vadd.f32 %v158, %v156
    %v160 = vadd.f32 %v159, %v157
    %161 = vst [vmem:[%s5] sm:$0xff] %v160
    // Predicated region
    $region18: #{cross_entropy_loss.2} parent=1 // pred_check
      _
    $region19: #{cross_entropy_loss.2} parent=1 // pred_check_branch
      %163 = sbr.rel (0) target = $region21
    $region20: #{cross_entropy_loss.2} parent=1 // pred_region
      _
    $region21: #{cross_entropy_loss.2} parent=1 // pred_fallthru
      _
    // Predicated region
    $region22: #{cross_entropy_loss.2} parent=1 // pred_check
      _
    $region23: #{cross_entropy_loss.2} parent=1 // pred_check_branch
      %165 = sbr.rel (0) target = $region25
    $region24: #{cross_entropy_loss.2} parent=1 // pred_region
      _
    $region25: #{cross_entropy_loss.2} parent=1 // pred_fallthru
      _
    %166 = vsyncpa [#allocation13], 1

</llo_original>
